<compile_context>
chip_gen: v5e
topology: v5e:2x2
jax: 0.10.0
libtpu: 0.0.40
codegen_flags: <defaults>
</compile_context>

<pallas_src>
import functools

import jax
import jax.numpy as jnp
from jax import lax
from jax.experimental import pallas as pl
from jax.experimental.pallas import tpu as pltpu


def _round_up(x, m):
    return (x + m - 1) // m * m


def _cross_attention_kernel(v_ref, w_ref, wt_ref, b_ref,
                            w_align_ref, v_align_ref, *, lv, lw):
    bt, lvp, ep = v_ref.shape
    _, lwp, _ = w_ref.shape
    hp = wt_ref.shape[1]

    vb = v_ref[...]                                   # (bt, lvp, ep)  bf16
    wb = w_ref[...]                                   # (bt, lwp, ep)  bf16
    wt = wt_ref[...]                                  # (ep, hp)       bf16
    bias = b_ref[...].astype(jnp.float32)             # (1, hp)        f32

    # ---- fused projection: one (bt*(lvp+lwp), ep) @ (ep, hp) MXU matmul ----
    x = jnp.concatenate(
        [vb.reshape(bt * lvp, ep), wb.reshape(bt * lwp, ep)], axis=0)
    proj = lax.dot_general(x, wt, (((1,), (0,)), ((), ())),
                           preferred_element_type=jnp.float32)
    t = jnp.maximum(proj + bias, 0.0)                  # f32, (bt*(lvp+lwp), hp)
    t_v = t[: bt * lvp].reshape(bt, lvp, hp).astype(jnp.bfloat16)
    t_w = t[bt * lvp:].reshape(bt, lwp, hp).astype(jnp.bfloat16)

    # ---- similarity: contract the hidden axis directly (no explicit .T) ----
    sim = lax.dot_general(t_v, t_w, (((2,), (2,)), ((0,), (0,))),
                          preferred_element_type=jnp.float32)  # (bt, lvp, lwp)

    # masks for padded sequence positions (static; no-ops when unpadded)
    sim_v = sim
    if lw < lwp:
        kmask = lax.broadcasted_iota(jnp.int32, (1, lvp, lwp), 2) < lw
        sim_v = jnp.where(kmask, sim, -jnp.inf)
    sim_w = sim
    if lv < lvp:
        qmask = lax.broadcasted_iota(jnp.int32, (1, lvp, lwp), 1) < lv
        sim_w = jnp.where(qmask, sim, -jnp.inf)

    # softmax over the Lw axis (torch dim=2): alpha_v
    e_v = jnp.exp(sim_v - jnp.max(sim_v, axis=2, keepdims=True))
    alpha_v = e_v * pl.reciprocal(jnp.sum(e_v, axis=2, keepdims=True),
                                  approx=True)

    # softmax over the Lv axis (torch dim=1); kept untransposed — the
    # transpose is folded into the contraction producing v_alignment.
    e_w = jnp.exp(sim_w - jnp.max(sim_w, axis=1, keepdims=True))
    alpha_c = e_w * pl.reciprocal(jnp.sum(e_w, axis=1, keepdims=True),
                                  approx=True)

    # w_alignment[b,q,e] = sum_k alpha_v[b,q,k] * w[b,k,e]
    w_align_ref[...] = lax.dot_general(
        alpha_v.astype(jnp.bfloat16), wb, (((2,), (1,)), ((0,), (0,))),
        preferred_element_type=jnp.float32).astype(w_align_ref.dtype)

    # v_alignment[b,k,e] = sum_q alpha_c[b,q,k] * v[b,q,e]   (== alpha_w @ v)
    v_align_ref[...] = lax.dot_general(
        alpha_c.astype(jnp.bfloat16), vb, (((1,), (1,)), ((0,), (0,))),
        preferred_element_type=jnp.float32).astype(v_align_ref.dtype)


@jax.jit
def cross_attention(v, w, weight, bias):
    """v: (B, Lv, E), w: (B, Lw, E), weight: (H, E) torch layout, bias: (H,)."""
    B, Lv, E = v.shape
    _, Lw, _ = w.shape
    H = weight.shape[0]

    # lane/sublane-aligned padded sizes
    Ep = _round_up(E, 128)
    Hp = _round_up(H, 128)
    Lvp = _round_up(Lv, 8)
    Lwp = _round_up(Lw, 8)

    # Batch elements per grid step: amortize the ~0.35us/step pipeline
    # overhead, keep the per-step working set around ~2 MiB, and keep >= 2
    # grid steps when B allows so both v7x TensorCores get work.
    per_b = (Lvp + Lwp) * (Ep * 6 + Hp * 4) + 6 * Lvp * Lwp * 4
    bt = max(1, min(B, (2 * 1024 * 1024) // max(per_b, 1)))
    if B >= 2:
        bt = min(bt, -(-B // 2))            # ceil(B/2): at least 2 grid steps
    Bp = _round_up(B, bt)
    n_steps = Bp // bt

    f32, bf16 = jnp.float32, jnp.bfloat16

    # Zero-pad and cast MXU operands to bf16 (padding is exact: padded E/H
    # rows/cols of weight and padded bias entries are zero).
    vp = jnp.zeros((Bp, Lvp, Ep), bf16).at[:B, :Lv, :E].set(v.astype(bf16))
    wp = jnp.zeros((Bp, Lwp, Ep), bf16).at[:B, :Lw, :E].set(w.astype(bf16))
    wtp = jnp.zeros((Ep, Hp), bf16).at[:E, :H].set(weight.T.astype(bf16))
    bp = jnp.zeros((1, Hp), f32).at[0, :H].set(bias.astype(f32))

    out_shapes = (
        jax.ShapeDtypeStruct((Bp, Lvp, Ep), f32),   # w_alignment (padded)
        jax.ShapeDtypeStruct((Bp, Lwp, Ep), f32),   # v_alignment (padded)
    )

    # Explicit VMEM budget (review: v7x has only 64 MiB physical).
    block_bytes = bt * ((Lvp + Lwp) * Ep * (2 + 4)     # bf16 in + f32 out
                        + (Lvp + Lwp) * Hp * 4         # projection (f32)
                        + 6 * Lvp * Lwp * 4)           # sim / softmax temps
    block_bytes += Ep * Hp * 2 + Hp * 4                # resident weight/bias
    vmem_limit = int(min(64 * 2 ** 20, max(16 * 2 ** 20, 4 * block_bytes)))

    kernel = functools.partial(_cross_attention_kernel, lv=Lv, lw=Lw)

    w_align_p, v_align_p = pl.pallas_call(
        kernel,
        out_shape=out_shapes,
        grid=(n_steps,),
        in_specs=[
            pl.BlockSpec((bt, Lvp, Ep), lambda i: (i, 0, 0)),
            pl.BlockSpec((bt, Lwp, Ep), lambda i: (i, 0, 0)),
            # constant block index -> weight/bias stay resident across steps
            pl.BlockSpec((Ep, Hp), lambda i: (0, 0)),
            pl.BlockSpec((1, Hp), lambda i: (0, 0)),
        ],
        out_specs=(
            pl.BlockSpec((bt, Lvp, Ep), lambda i: (i, 0, 0)),
            pl.BlockSpec((bt, Lwp, Ep), lambda i: (i, 0, 0)),
        ),
        compiler_params=pltpu.CompilerParams(
            dimension_semantics=("parallel",),
            vmem_limit_bytes=vmem_limit),
    )(vp, wp, wtp, bp)

    return w_align_p[:B, :Lv, :E], v_align_p[:B, :Lw, :E]


def _reference(v, w, weight, bias):
    t_v = jnp.maximum(v @ weight.T + bias, 0.0)
    t_w = jnp.maximum(w @ weight.T + bias, 0.0)
    sim = jnp.einsum("bqh,bkh->bqk", t_v, t_w)
    alpha_v = jax.nn.softmax(sim, axis=2)
    alpha_w = jnp.swapaxes(jax.nn.softmax(sim, axis=1), 1, 2)
    w_align = jnp.einsum("bqk,bke->bqe", alpha_v, w)
    v_align = jnp.einsum("bkq,bqe->bke", alpha_w, v)
    return w_align, v_align


if __name__ == "__main__":
    B, Lv, Lw = 2, 8, 16
    emb_size, hidden_size = 32, 64

    key = jax.random.PRNGKey(0)
    kv, kw, kwt, kb = jax.random.split(key, 4)

    v = jax.random.normal(kv, (B, Lv, emb_size), dtype=jnp.float32)
    w = jax.random.normal(kw, (B, Lw, emb_size), dtype=jnp.float32)

    # Deterministic Linear params (PyTorch-style uniform(-1/sqrt(E), 1/sqrt(E))).
    bound = 1.0 / (emb_size ** 0.5)
    weight = jax.random.uniform(kwt, (hidden_size, emb_size),
                                minval=-bound, maxval=bound, dtype=jnp.float32)
    bias = jax.random.uniform(kb, (hidden_size,),
                              minval=-bound, maxval=bound, dtype=jnp.float32)

    w_align, v_align = cross_attention(v, w, weight, bias)
    jax.block_until_ready((w_align, v_align))

    w_ref, v_ref = _reference(v, w, weight, bias)
    # bf16 MXU operands -> loosened tolerance (softmax / accumulation in f32).
    assert jnp.allclose(w_align, w_ref, atol=5e-2, rtol=5e-2), \
        float(jnp.max(jnp.abs(w_align - w_ref)))
    assert jnp.allclose(v_align, v_ref, atol=5e-2, rtol=5e-2), \
        float(jnp.max(jnp.abs(v_align - v_ref)))

    print("KERNEL_OK")
</pallas_src>

<mosaic_0001>
module attributes {stable_mosaic.version = 11 : i64} {
  func.func @_cross_attention_kernel(%arg0: i32, %arg1: memref<1x8x128xbf16, #tpu.memory_space<vmem>>, %arg2: memref<1x16x128xbf16, #tpu.memory_space<vmem>>, %arg3: memref<128x128xbf16, #tpu.memory_space<vmem>>, %arg4: memref<1x128xf32, #tpu.memory_space<vmem>>, %arg5: memref<1x8x128xf32, #tpu.memory_space<vmem>>, %arg6: memref<1x16x128xf32, #tpu.memory_space<vmem>>) attributes {dimension_semantics = [#tpu.dimension_semantics<parallel>], iteration_bounds = array<i64: 2>, scalar_prefetch = 0 : i64, scratch_operands = 0 : i64, tpu.core_type = #tpu.core_type<tc>, window_params = [{transform_indices = @transform_0, window_bounds = array<i64: 1, 8, 128>}, {transform_indices = @transform_1, window_bounds = array<i64: 1, 16, 128>}, {pipeline_mode = #tpu.pipeline_mode<synchronous>, transform_indices = @transform_2, window_bounds = array<i64: 128, 128>}, {pipeline_mode = #tpu.pipeline_mode<synchronous>, transform_indices = @transform_3, window_bounds = array<i64: 1, 128>}, {transform_indices = @transform_4, window_bounds = array<i64: 1, 8, 128>}, {transform_indices = @transform_5, window_bounds = array<i64: 1, 16, 128>}]} {
    %c0 = arith.constant 0 : index
    %c0_0 = arith.constant 0 : index
    %c0_1 = arith.constant 0 : index
    %0 = vector.load %arg1[%c0, %c0_0, %c0_1] : memref<1x8x128xbf16, #tpu.memory_space<vmem>>, vector<1x8x128xbf16>
    %c0_2 = arith.constant 0 : index
    %c0_3 = arith.constant 0 : index
    %c0_4 = arith.constant 0 : index
    %1 = vector.load %arg2[%c0_2, %c0_3, %c0_4] : memref<1x16x128xbf16, #tpu.memory_space<vmem>>, vector<1x16x128xbf16>
    %c0_5 = arith.constant 0 : index
    %c0_6 = arith.constant 0 : index
    %2 = vector.load %arg3[%c0_5, %c0_6] : memref<128x128xbf16, #tpu.memory_space<vmem>>, vector<128x128xbf16>
    %c0_7 = arith.constant 0 : index
    %c0_8 = arith.constant 0 : index
    %3 = vector.load %arg4[%c0_7, %c0_8] : memref<1x128xf32, #tpu.memory_space<vmem>>, vector<1x128xf32>
    %4 = vector.shape_cast %0 : vector<1x8x128xbf16> to vector<8x128xbf16>
    %5 = vector.shape_cast %1 : vector<1x16x128xbf16> to vector<16x128xbf16>
    %6 = tpu.concatenate %4, %5 in 0 : vector<8x128xbf16>, vector<16x128xbf16> -> vector<24x128xbf16>
    %cst = arith.constant dense<0.000000e+00> : vector<24x128xf32>
    %7 = tpu.matmul %6, %2, %cst {dimension_numbers = #tpu.dot_dimension_numbers<[1], [0], [0], [1], [0, 0, 1, 1], [], []>} : vector<24x128xbf16>, vector<128x128xbf16>, vector<24x128xf32> -> vector<24x128xf32>
    %8 = vector.broadcast %3 : vector<1x128xf32> to vector<24x128xf32>
    %9 = arith.addf %7, %8 : vector<24x128xf32>
    %cst_9 = arith.constant 0.000000e+00 : f32
    %10 = vector.broadcast %cst_9 : f32 to vector<24x128xf32>
    %11 = arith.maximumf %9, %10 : vector<24x128xf32>
    %12 = vector.extract_strided_slice %11 {offsets = [0, 0], sizes = [8, 128], strides = [1, 1]} : vector<24x128xf32> to vector<8x128xf32>
    %13 = vector.shape_cast %12 : vector<8x128xf32> to vector<1x8x128xf32>
    %14 = arith.truncf %13 : vector<1x8x128xf32> to vector<1x8x128xbf16>
    %15 = vector.extract_strided_slice %11 {offsets = [8, 0], sizes = [16, 128], strides = [1, 1]} : vector<24x128xf32> to vector<16x128xf32>
    %16 = vector.shape_cast %15 : vector<16x128xf32> to vector<1x16x128xf32>
    %17 = arith.truncf %16 : vector<1x16x128xf32> to vector<1x16x128xbf16>
    %cst_10 = arith.constant dense<0.000000e+00> : vector<1x8x16xf32>
    %18 = tpu.matmul %14, %17, %cst_10 {dimension_numbers = #tpu.dot_dimension_numbers<[2], [2], [1], [1], [0, 0, 0, 1, 1, 1], [0], [0]>} : vector<1x8x128xbf16>, vector<1x16x128xbf16>, vector<1x8x16xf32> -> vector<1x8x16xf32>
    %cst_11 = arith.constant dense<0xFF800000> : vector<1x8xf32>
    %19 = vector.multi_reduction <maximumf>, %18, %cst_11 [2] : vector<1x8x16xf32> to vector<1x8xf32>
    %20 = vector.shape_cast %19 : vector<1x8xf32> to vector<1x8x1xf32>
    %21 = vector.broadcast %20 : vector<1x8x1xf32> to vector<1x8x16xf32>
    %22 = arith.subf %18, %21 : vector<1x8x16xf32>
    %23 = math.exp %22 : vector<1x8x16xf32>
    %cst_12 = arith.constant dense<0.000000e+00> : vector<1x8xf32>
    %24 = vector.multi_reduction <add>, %23, %cst_12 [2] : vector<1x8x16xf32> to vector<1x8xf32>
    %25 = vector.shape_cast %24 : vector<1x8xf32> to vector<1x8x1xf32>
    %26 = tpu.reciprocal %25 {approx = true} : vector<1x8x1xf32> -> vector<1x8x1xf32>
    %27 = vector.broadcast %26 : vector<1x8x1xf32> to vector<1x8x16xf32>
    %28 = arith.mulf %23, %27 : vector<1x8x16xf32>
    %cst_13 = arith.constant dense<0xFF800000> : vector<1x16xf32>
    %29 = vector.multi_reduction <maximumf>, %18, %cst_13 [1] : vector<1x8x16xf32> to vector<1x16xf32>
    %30 = vector.shape_cast %29 : vector<1x16xf32> to vector<1x1x16xf32>
    %31 = vector.broadcast %30 : vector<1x1x16xf32> to vector<1x8x16xf32>
    %32 = arith.subf %18, %31 : vector<1x8x16xf32>
    %33 = math.exp %32 : vector<1x8x16xf32>
    %cst_14 = arith.constant dense<0.000000e+00> : vector<1x16xf32>
    %34 = vector.multi_reduction <add>, %33, %cst_14 [1] : vector<1x8x16xf32> to vector<1x16xf32>
    %35 = vector.shape_cast %34 : vector<1x16xf32> to vector<1x1x16xf32>
    %36 = tpu.reciprocal %35 {approx = true} : vector<1x1x16xf32> -> vector<1x1x16xf32>
    %37 = vector.broadcast %36 : vector<1x1x16xf32> to vector<1x8x16xf32>
    %38 = arith.mulf %33, %37 : vector<1x8x16xf32>
    %39 = arith.truncf %28 : vector<1x8x16xf32> to vector<1x8x16xbf16>
    %cst_15 = arith.constant dense<0.000000e+00> : vector<1x8x128xf32>
    %40 = tpu.matmul %39, %1, %cst_15 {dimension_numbers = #tpu.dot_dimension_numbers<[2], [1], [1], [2], [0, 0, 0, 1, 1, 2], [0], [0]>} : vector<1x8x16xbf16>, vector<1x16x128xbf16>, vector<1x8x128xf32> -> vector<1x8x128xf32>
    %c0_16 = arith.constant 0 : index
    %c0_17 = arith.constant 0 : index
    %c0_18 = arith.constant 0 : index
    %41 = vector.load %arg5[%c0_16, %c0_17, %c0_18] : memref<1x8x128xf32, #tpu.memory_space<vmem>>, vector<1x8x128xf32>
    tpu.vector_store %arg5[%c0_16, %c0_17, %c0_18], %40 {strides = array<i32>} : memref<1x8x128xf32, #tpu.memory_space<vmem>>, vector<1x8x128xf32>,
    %42 = arith.truncf %38 : vector<1x8x16xf32> to vector<1x8x16xbf16>
    %cst_19 = arith.constant dense<0.000000e+00> : vector<1x16x128xf32>
    %43 = tpu.matmul %42, %0, %cst_19 {dimension_numbers = #tpu.dot_dimension_numbers<[1], [1], [2], [2], [0, 0, 0, 2, 1, 2], [0], [0]>} : vector<1x8x16xbf16>, vector<1x8x128xbf16>, vector<1x16x128xf32> -> vector<1x16x128xf32>
    %c0_20 = arith.constant 0 : index
    %c0_21 = arith.constant 0 : index
    %c0_22 = arith.constant 0 : index
    %44 = vector.load %arg6[%c0_20, %c0_21, %c0_22] : memref<1x16x128xf32, #tpu.memory_space<vmem>>, vector<1x16x128xf32>
    tpu.vector_store %arg6[%c0_20, %c0_21, %c0_22], %43 {strides = array<i32>} : memref<1x16x128xf32, #tpu.memory_space<vmem>>, vector<1x16x128xf32>,
    return
  }
  func.func @transform_0(%arg0: i32) -> (i32, i32, i32) {
    %c0_i32 = arith.constant 0 : i32
    %c0_i32_0 = arith.constant 0 : i32
    %c0_i32_1 = arith.constant 0 : i32
    return %arg0, %c0_i32, %c0_i32_0 : i32, i32, i32
  }
  func.func @transform_1(%arg0: i32) -> (i32, i32, i32) {
    %c0_i32 = arith.constant 0 : i32
    %c0_i32_0 = arith.constant 0 : i32
    %c0_i32_1 = arith.constant 0 : i32
    return %arg0, %c0_i32, %c0_i32_0 : i32, i32, i32
  }
  func.func @transform_2(%arg0: i32) -> (i32, i32) {
    %c0_i32 = arith.constant 0 : i32
    %c0_i32_0 = arith.constant 0 : i32
    %c0_i32_1 = arith.constant 0 : i32
    return %c0_i32, %c0_i32_0 : i32, i32
  }
  func.func @transform_3(%arg0: i32) -> (i32, i32) {
    %c0_i32 = arith.constant 0 : i32
    %c0_i32_0 = arith.constant 0 : i32
    %c0_i32_1 = arith.constant 0 : i32
    return %c0_i32, %c0_i32_0 : i32, i32
  }
  func.func @transform_4(%arg0: i32) -> (i32, i32, i32) {
    %c0_i32 = arith.constant 0 : i32
    %c0_i32_0 = arith.constant 0 : i32
    %c0_i32_1 = arith.constant 0 : i32
    return %arg0, %c0_i32, %c0_i32_0 : i32, i32, i32
  }
  func.func @transform_5(%arg0: i32) -> (i32, i32, i32) {
    %c0_i32 = arith.constant 0 : i32
    %c0_i32_0 = arith.constant 0 : i32
    %c0_i32_1 = arith.constant 0 : i32
    return %arg0, %c0_i32, %c0_i32_0 : i32, i32, i32
  }
}

</mosaic_0001>

<llo_original>
// kernel: cross_attention.1
$region0: #{cross_attention.1}
  #allocation0 [shape = 'u32[]', space=smem, size = 0x4, offset = 0x4, fixed_abs, tag = 'smem constant byte address 0x4 - core index']
  #allocation1 [shape = 'u32[72,128]{1,0:T(1,128)}', space=vmem, size = 0x9000, scoped, tag = 'internal scratch']
  %s0 = inlined_call_operand.vmem [shape: bf16[2,8,128], index: 0, kind: input, shape index: {}]
  %s1 = inlined_call_operand.vmem [shape: bf16[2,16,128], index: 1, kind: input, shape index: {}]
  %s2 = inlined_call_operand.vmem [shape: bf16[128,128], index: 2, kind: input, shape index: {}]
  %s3 = inlined_call_operand.vmem [shape: f32[1,128], index: 3, kind: input, shape index: {}]
  %s4 = inlined_call_operand.hbm [shape: f32[2,8,128], index: 4, kind: output, shape index: {0}]
  %s5 = inlined_call_operand.hbm [shape: f32[2,16,128], index: 5, kind: output, shape index: {1}]
  %6 = xla_tuple %s4, %s5
  %s7 = sld [smem:[#allocation0]]
  $region57: #{cross_attention.1} parent=0
    _
  %s9 = ssub.s32 1, %s7
  %s10 = scalar_select 0, %s9, %s7
  $region1: #{cross_attention.1} parent=0
    #allocation2 [shape = 'u8[8192]{0}', space=vmem, size = 0x2000, scoped, tag = 'output window, operand 0']
    #allocation3 [shape = 's32[2]{0}', space=sflag, size = 0x8, scoped, tag = 'scoped memory for cross_attention.1']
    #allocation4 [shape = 'u8[16384]{0}', space=vmem, size = 0x4000, scoped, tag = 'output window, operand 1']
    #allocation5 [shape = 's32[2]{0}', space=sflag, size = 0x8, scoped, tag = 'scoped memory for cross_attention.1']
    %11 = vsyncpa [#allocation3], 0
    %s12 = scalar_lea.sflag [#allocation3], 1
    %13 = vsyncpa %s12, 0
    %14 = vsyncpa [#allocation5], 0
    %s15 = scalar_lea.sflag [#allocation5], 1
    %16 = vsyncpa %s15, 0
    loop: start=0, step=1, limit=4
    $region2: #{cross_attention.1} parent=1 // loop_pre_header
      _
    $region3: #{cross_attention.1} parent=1 // loop_header
      %s18 = sphi 0, %s22
      %p19 = scmp.ge.s32.totalorder %s18, 4
      %s28 = sphi 0, %s30
      %s31 = sphi 0, %s28
      %s32 = sphi 0, %s31
      %s48 = sphi 0, %s32
      %s54 = sphi 0, %s56
      %s57 = sphi 0, %s54
      %s58 = sphi 0, %s57
      %s74 = sphi 0, %s58
      %s78 = sphi 0, %s78
      %s80 = sphi 0, %s78
      %s81 = sphi 0, %s80
      %s95 = sphi 0, %s81
      %s99 = sphi 0, %s99
      %s101 = sphi 0, %s99
      %s102 = sphi 0, %s101
      %s116 = sphi 0, %s102
      %s122 = sphi 0, %s124
      %s125 = sphi 0, %s122
      %s126 = sphi 0, %s125
      %s142 = sphi 0, %s126
      %s148 = sphi 0, %s150
      %s151 = sphi 0, %s148
      %s152 = sphi 0, %s151
      %s168 = sphi 0, %s152
    $region4: #{cross_attention.1} parent=1 // loop_header_branch
      %21 = sbr.rel (%p19) target = $region8
    $region5: #{cross_attention.1} parent=1 // loop_body
      %s23 = ssub.s32 %s18, 1
      %s24 = ssub.s32 %s18, 2
      %s25 = sadd.s32 %s18, 1
      %s26 = ssub.s32 %s18, %s25
      %p27 = scmp.eq.s32.totalorder %s26, 0
      %s29 = sadd.s32 %s28, 1
      %s30 = scalar_select %p27, %s28, %s29
      %p33 = pneg %p27
      %p34 = scmp.eq.s32.totalorder %s18, 1
      %p35 = por %p33, %p34
      %p36 = scmp.ne.s32.totalorder %s28, %s31
      %p37 = scmp.eq.s32.totalorder %s18, 0
      %p38 = por %p36, %p37
      %p39 = scmp.ne.s32.totalorder %s28, %s31
      %p40 = scmp.eq.s32.totalorder %s23, 1
      %p41 = por %p39, %p40
      %p42 = scmp.ne.s32.totalorder %s31, %s32
      %p43 = scmp.eq.s32.totalorder %s23, 0
      %p44 = por %p42, %p43
      %p45 = scmp.ne.s32.totalorder %s31, %s32
      %p46 = scmp.eq.s32.totalorder %s24, 1
      %p47 = por %p45, %p46
      %p49 = scmp.ne.s32.totalorder %s32, %s48
      %p50 = scmp.eq.s32.totalorder %s24, 0
      %p51 = por %p49, %p50
      %s52 = ssub.s32 %s18, %s25
      %p53 = scmp.eq.s32.totalorder %s52, 0
      %s55 = sadd.s32 %s54, 1
      %s56 = scalar_select %p53, %s54, %s55
      %p59 = pneg %p53
      %p60 = scmp.eq.s32.totalorder %s18, 1
      %p61 = por %p59, %p60
      %p62 = scmp.ne.s32.totalorder %s54, %s57
      %p63 = scmp.eq.s32.totalorder %s18, 0
      %p64 = por %p62, %p63
      %p65 = scmp.ne.s32.totalorder %s54, %s57
      %p66 = scmp.eq.s32.totalorder %s23, 1
      %p67 = por %p65, %p66
      %p68 = scmp.ne.s32.totalorder %s57, %s58
      %p69 = scmp.eq.s32.totalorder %s23, 0
      %p70 = por %p68, %p69
      %p71 = scmp.ne.s32.totalorder %s57, %s58
      %p72 = scmp.eq.s32.totalorder %s24, 1
      %p73 = por %p71, %p72
      %p75 = scmp.ne.s32.totalorder %s58, %s74
      %p76 = scmp.eq.s32.totalorder %s24, 0
      %p77 = por %p75, %p76
      %s79 = sadd.s32 %s78, 1
      %p82 = scmp.eq.s32.totalorder %s18, 1
      %p83 = scmp.ne.s32.totalorder %s78, %s80
      %p84 = scmp.eq.s32.totalorder %s18, 0
      %p85 = por %p83, %p84
      %p86 = scmp.ne.s32.totalorder %s78, %s80
      %p87 = scmp.eq.s32.totalorder %s23, 1
      %p88 = por %p86, %p87
      %p89 = scmp.ne.s32.totalorder %s80, %s81
      %p90 = scmp.eq.s32.totalorder %s23, 0
      %p91 = por %p89, %p90
      %p92 = scmp.ne.s32.totalorder %s80, %s81
      %p93 = scmp.eq.s32.totalorder %s24, 1
      %p94 = por %p92, %p93
      %p96 = scmp.ne.s32.totalorder %s81, %s95
      %p97 = scmp.eq.s32.totalorder %s24, 0
      %p98 = por %p96, %p97
      %s100 = sadd.s32 %s99, 1
      %p103 = scmp.eq.s32.totalorder %s18, 1
      %p104 = scmp.ne.s32.totalorder %s99, %s101
      %p105 = scmp.eq.s32.totalorder %s18, 0
      %p106 = por %p104, %p105
      %p107 = scmp.ne.s32.totalorder %s99, %s101
      %p108 = scmp.eq.s32.totalorder %s23, 1
      %p109 = por %p107, %p108
      %p110 = scmp.ne.s32.totalorder %s101, %s102
      %p111 = scmp.eq.s32.totalorder %s23, 0
      %p112 = por %p110, %p111
      %p113 = scmp.ne.s32.totalorder %s101, %s102
      %p114 = scmp.eq.s32.totalorder %s24, 1
      %p115 = por %p113, %p114
      %p117 = scmp.ne.s32.totalorder %s102, %s116
      %p118 = scmp.eq.s32.totalorder %s24, 0
      %p119 = por %p117, %p118
      %s120 = ssub.s32 %s18, %s25
      %p121 = scmp.eq.s32.totalorder %s120, 0
      %s123 = sadd.s32 %s122, 1
      %s124 = scalar_select %p121, %s122, %s123
      %p127 = pneg %p121
      %p128 = scmp.eq.s32.totalorder %s18, 1
      %p129 = por %p127, %p128
      %p130 = scmp.ne.s32.totalorder %s122, %s125
      %p131 = scmp.eq.s32.totalorder %s18, 0
      %p132 = por %p130, %p131
      %p133 = scmp.ne.s32.totalorder %s122, %s125
      %p134 = scmp.eq.s32.totalorder %s23, 1
      %p135 = por %p133, %p134
      %p136 = scmp.ne.s32.totalorder %s125, %s126
      %p137 = scmp.eq.s32.totalorder %s23, 0
      %p138 = por %p136, %p137
      %p139 = scmp.ne.s32.totalorder %s125, %s126
      %p140 = scmp.eq.s32.totalorder %s24, 1
      %p141 = por %p139, %p140
      %p143 = scmp.ne.s32.totalorder %s126, %s142
      %p144 = scmp.eq.s32.totalorder %s24, 0
      %p145 = por %p143, %p144
      %s146 = ssub.s32 %s18, %s25
      %p147 = scmp.eq.s32.totalorder %s146, 0
      %s149 = sadd.s32 %s148, 1
      %s150 = scalar_select %p147, %s148, %s149
      %p153 = pneg %p147
      %p154 = scmp.eq.s32.totalorder %s18, 1
      %p155 = por %p153, %p154
      %p156 = scmp.ne.s32.totalorder %s148, %s151
      %p157 = scmp.eq.s32.totalorder %s18, 0
      %p158 = por %p156, %p157
      %p159 = scmp.ne.s32.totalorder %s148, %s151
      %p160 = scmp.eq.s32.totalorder %s23, 1
      %p161 = por %p159, %p160
      %p162 = scmp.ne.s32.totalorder %s151, %s152
      %p163 = scmp.eq.s32.totalorder %s23, 0
      %p164 = por %p162, %p163
      %p165 = scmp.ne.s32.totalorder %s151, %s152
      %p166 = scmp.eq.s32.totalorder %s24, 1
      %p167 = por %p165, %p166
      %p169 = scmp.ne.s32.totalorder %s152, %s168
      %p170 = scmp.eq.s32.totalorder %s24, 0
      %p171 = por %p169, %p170
      %p172 = scmp.le.s32.totalorder 1, %s18
      %p173 = scmp.lt.s32.totalorder %s18, 3
      %p174 = pnand %p172, %p173
      %p175 = pneg %p174
      // Predicated region
      $region9: #{cross_attention.1} parent=5 // pred_check
        _
      $region10: #{cross_attention.1} parent=5 // pred_check_branch
        %177 = sbr.rel (%p174) target = $region12
      $region11: #{cross_attention.1} parent=5 // pred_region
        %s178 = ssub.s32 %s18, 1
        // Predicated region
        $region13: #{cross_attention.1} parent=11 // pred_check
          %p179 = pneg %p91
        $region14: #{cross_attention.1} parent=11 // pred_check_branch
          %181 = sbr.rel (%p179) target = $region16
        $region15: #{cross_attention.1} parent=11 // pred_region
          _
        $region16: #{cross_attention.1} parent=11 // pred_fallthru
          _
        // Predicated region
        $region17: #{cross_attention.1} parent=11 // pred_check
          %p182 = pneg %p112
        $region18: #{cross_attention.1} parent=11 // pred_check_branch
          %184 = sbr.rel (%p182) target = $region20
        $region19: #{cross_attention.1} parent=11 // pred_region
          _
        $region20: #{cross_attention.1} parent=11 // pred_fallthru
          _
      $region12: #{cross_attention.1} parent=5 // pred_fallthru
        _
      %p185 = scmp.lt.s32.totalorder %s18, 2
      // Predicated region
      $region21: #{cross_attention.1} parent=5 // pred_check
        %p186 = pneg %p185
      $region22: #{cross_attention.1} parent=5 // pred_check_branch
        %188 = sbr.rel (%p186) target = $region24
      $region23: #{cross_attention.1} parent=5 // pred_region
        // Predicated region
        $region25: #{cross_attention.1} parent=23 // pred_check
          %p189 = pneg %p38
        $region26: #{cross_attention.1} parent=23 // pred_check_branch
          %191 = sbr.rel (%p189) target = $region28
        $region27: #{cross_attention.1} parent=23 // pred_region
          %p192 = scmp.lt.s32.totalorder %s18, 1
          %s193 = scalar_select %p192, %s18, 1
          %s194 = smul.addr %s193, 4
          %s195 = scalar_lea.vmem %s0, %s194
        $region28: #{cross_attention.1} parent=23 // pred_fallthru
          _
        // Predicated region
        $region29: #{cross_attention.1} parent=23 // pred_check
          %p196 = pneg %p64
        $region30: #{cross_attention.1} parent=23 // pred_check_branch
          %198 = sbr.rel (%p196) target = $region32
        $region31: #{cross_attention.1} parent=23 // pred_region
          %p199 = scmp.lt.s32.totalorder %s18, 1
          %s200 = scalar_select %p199, %s18, 1
          %s201 = smul.addr %s200, 2
          %s202 = smul.addr %s201, 4
          %s203 = scalar_lea.vmem %s1, %s202
        $region32: #{cross_attention.1} parent=23 // pred_fallthru
          _
      $region24: #{cross_attention.1} parent=5 // pred_fallthru
        _
      %p204 = scmp.le.s32.totalorder 1, %s18
      %p205 = scmp.lt.s32.totalorder %s18, 3
      %p206 = pnand %p204, %p205
      %p207 = pneg %p206
      // Predicated region
      $region33: #{cross_attention.1} parent=5 // pred_check
        _
      $region34: #{cross_attention.1} parent=5 // pred_check_branch
        %209 = sbr.rel (%p206) target = $region36
      $region35: #{cross_attention.1} parent=5 // pred_region
        %s210 = ssub.s32 %s18, 1
        %p211 = scmp.lt.s32.totalorder %s23, 1
        %s212 = scalar_select %p211, %s23, 1
        %s213 = smul.addr %s212, 4
        %s214 = scalar_lea.vmem %s0, %s213
        %p215 = pneg %p44
        %p216 = pneg %p41
        %p217 = scmp.lt.s32.totalorder %s23, 1
        %s218 = scalar_select %p217, %s23, 1
        %s219 = smul.addr %s218, 2
        %s220 = smul.addr %s219, 4
        %s221 = scalar_lea.vmem %s1, %s220
        %p222 = pneg %p70
        %p223 = pneg %p67
        %p224 = pneg %p91
        %p225 = pneg %p88
        %p226 = pneg %p112
        %p227 = pneg %p109
        %p228 = pneg %p138
        %p229 = pneg %p135
        %s230 = sand.u32 %s125, 1
        %s231 = scalar_lea.sflag [#allocation3], %s230
        %s232 = sand.u32 %s125, 1
        %s233 = smul.addr %s232, 8
        %s234 = scalar_lea.vmem [#allocation2], %s233
        %p235 = pneg %p164
        %p236 = pneg %p161
        %s237 = sand.u32 %s151, 1
        %s238 = scalar_lea.sflag [#allocation5], %s237
        %s239 = sand.u32 %s151, 1
        %s240 = smul.addr %s239, 16
        %s241 = scalar_lea.vmem [#allocation4], %s240
        %p242 = scmp.lt.s32.totalorder %s23, 1
        %s243 = scalar_select %p242, %s23, 1
        %s244 = smul.addr %s243, 4
        %s245 = scalar_lea.vmem %s0, %s244
        %p246 = scmp.lt.s32.totalorder %s23, 1
        %s247 = scalar_select %p246, %s23, 1
        %s248 = smul.addr %s247, 2
        %s249 = smul.addr %s248, 4
        %s250 = scalar_lea.vmem %s1, %s249
        %v252 = vld [vmem:[%s245] sm:$0xf]
        %v253 = vld [vmem:[%s250] sm:$0xf]
        %v254 = vld [vmem:[%s250 + $0x4] sm:$0xf]
        %v255 = vld [vmem:[%s2] sm:$0xf]
        %v256 = vld [vmem:[%s2 + $0x4] sm:$0xf]
        %v257 = vld [vmem:[%s2 + $0x8] sm:$0xf]
        %v258 = vld [vmem:[%s2 + $0xc] sm:$0xf]
        %v259 = vld [vmem:[%s2 + $0x10] sm:$0xf]
        %v260 = vld [vmem:[%s2 + $0x14] sm:$0xf]
        %v261 = vld [vmem:[%s2 + $0x18] sm:$0xf]
        %v262 = vld [vmem:[%s2 + $0x1c] sm:$0xf]
        %v263 = vld [vmem:[%s2 + $0x20] sm:$0xf]
        %v264 = vld [vmem:[%s2 + $0x24] sm:$0xf]
        %v265 = vld [vmem:[%s2 + $0x28] sm:$0xf]
        %v266 = vld [vmem:[%s2 + $0x2c] sm:$0xf]
        %v267 = vld [vmem:[%s2 + $0x30] sm:$0xf]
        %v268 = vld [vmem:[%s2 + $0x34] sm:$0xf]
        %v269 = vld [vmem:[%s2 + $0x38] sm:$0xf]
        %v270 = vld [vmem:[%s2 + $0x3c] sm:$0xf]
        %v271 = vld [vmem:[%s3] sm:$0x1]
        %v274 = vunpack.c.l.b16 %v253
        %v275 = vunpack.c.l.b16 %v254
        %v276 = vpack.c.b16 %v274, %v274
        %v277 = vpack.c.b16 %v275, %v275
        %vm279 = vcmask 1043456
        %v282 = vsel %vm279, %v252, %v276
        %v285 = vperm.slane %v271, 0
        %v303 = vunpack.c.l.b16 %v255
        %v304 = vunpack.c.l.b16 %v256
        %v305 = vunpack.c.l.b16 %v257
        %v306 = vunpack.c.l.b16 %v258
        %v307 = vunpack.c.l.b16 %v259
        %v308 = vunpack.c.l.b16 %v260
        %v309 = vunpack.c.l.b16 %v261
        %v310 = vunpack.c.l.b16 %v262
        %v311 = vunpack.c.l.b16 %v263
        %v312 = vunpack.c.l.b16 %v264
        %v313 = vunpack.c.l.b16 %v265
        %v314 = vunpack.c.l.b16 %v266
        %v315 = vunpack.c.l.b16 %v267
        %v316 = vunpack.c.l.b16 %v268
        %v317 = vunpack.c.l.b16 %v269
        %v318 = vunpack.c.l.b16 %v270
        %v319 = vpack.c.b16 %v304, %v303
        %v320 = vpack.c.b16 %v306, %v305
        %v321 = vpack.c.b16 %v308, %v307
        %v322 = vpack.c.b16 %v310, %v309
        %v323 = vpack.c.b16 %v312, %v311
        %v324 = vpack.c.b16 %v314, %v313
        %v325 = vpack.c.b16 %v316, %v315
        %v326 = vpack.c.b16 %v318, %v317
        %335 = vmatpush.bf16.msra.mxu0 %v326
        %336 = vmatpush.bf16.msra.mxu0 %v325
        %337 = vmatpush.bf16.msra.mxu0 %v324
        %338 = vmatpush.bf16.msra.mxu0 %v323
        %339 = vmatpush.bf16.msra.mxu0 %v322
        %340 = vmatpush.bf16.msra.mxu0 %v321
        %341 = vmatpush.bf16.msra.mxu0 %v320
        %342 = vmatpush.bf16.msra.mxu0 %v319
        %343 = vmatmul.bf16.gmra.mxu0 %v282
        %v344 = vpop.f32.mrf.mxu0
        %v345 = vadd.f32 %v285, %v344
        %v346 = vpop.f32.mrf.mxu0
        %v347 = vadd.f32 %v285, %v346
        %348 = vmatmul.bf16.gmra.mxu0 %v277
        %v349 = vpop.f32.mrf.mxu0
        %v350 = vadd.f32 %v285, %v349
        %v351 = vpop.f32.mrf.mxu0
        %352 = vdwg.mxu0
        %v353 = vmax.f32 %v345, 0.0
        %v354 = vmax.f32 %v347, 0.0
        %v355 = vmax.f32 %v350, 0.0
        %v356 = vpack.c.bf16 %v353, %v353
        %v357 = vpack.c.bf16 %v354, %v354
        %v358 = vpack.c.bf16 %v355, %v355
        %v361 = vunpack.c.l.b16 %v357
        %v362 = vunpack.c.l.b16 %v358
        %v363 = vpack.c.b16 %v362, %v361
        %365 = vmatpush.bf16.xpose.msra.mxu0 0
        %366 = vmatpush.bf16.xpose.msra.mxu0 0
        %367 = vmatpush.bf16.xpose.msra.mxu0 0
        %368 = vmatpush.bf16.xpose.msra.mxu0 0
        %369 = vmatpush.bf16.xpose.msra.mxu0 0
        %370 = vmatpush.bf16.xpose.msra.mxu0 0
        %371 = vmatpush.bf16.xpose.msra.mxu0 0
        %372 = vmatpush.bf16.xpose.msra.mxu0 %v363
        %373 = vmatmul.bf16.gmra.mxu0 %v356
        %v374 = vpop.f32.mrf.mxu0
        %v375 = vadd.f32 0.0, %v374
        %v376 = vpop.f32.mrf.mxu0
        %377 = vdwg.mxu0
        %vm378 = vcmask 130048
        %v379 = vsel %vm378, %v375, -inf
        %380 = vmax.xlane.f32.xlu0 %v379
        %v381 = vpop.xlane.xlu0 %380
        %v382 = vsub.f32 %v375, %v381
        %v383 = vmul.f32 %v382, 1.442695
        %v384 = vpow.pop %v383
        %v385 = vsel %vm378, %v384, 0.0
        %386 = vadd.xlane.f32.xlu0 %v385
        %v387 = vpop.xlane.xlu0 %386
        %v388 = vrcp.pop %v387
        %v389 = vmul.f32 %v384, %v388
        %v390 = vrot.slane %v379, 4
        %v391 = vmax.f32 %v379, %v390
        %v392 = vrot.slane %v391, 2
        %v393 = vmax.f32 %v391, %v392
        %v394 = vrot.slane %v393, 1
        %v395 = vmax.f32 %v393, %v394
        %v396 = vsub.f32 %v375, %v395
        %v397 = vmul.f32 %v396, 1.442695
        %v398 = vpow.pop %v397
        %v399 = vsel %vm378, %v398, 0.0
        %v400 = vrot.slane %v399, 4
        %v401 = vadd.f32 %v399, %v400
        %v402 = vrot.slane %v401, 2
        %v403 = vadd.f32 %v401, %v402
        %v404 = vrot.slane %v403, 1
        %v405 = vadd.f32 %v403, %v404
        %v406 = vrcp.pop %v405
        %v407 = vmul.f32 %v398, %v406
        %v408 = vpack.c.bf16 %v389, %v389
        %v409 = vpack.c.b16 %v275, %v274
        %v412 = vsel %vm378, %v408, 0
        %414 = vmatpush.bf16.msra.mxu0 0
        %415 = vmatpush.bf16.msra.mxu0 0
        %416 = vmatpush.bf16.msra.mxu0 0
        %417 = vmatpush.bf16.msra.mxu0 0
        %418 = vmatpush.bf16.msra.mxu0 0
        %419 = vmatpush.bf16.msra.mxu0 0
        %420 = vmatpush.bf16.msra.mxu0 0
        %421 = vmatpush.bf16.msra.mxu0 %v409
        %422 = vmatmul.bf16.gmra.mxu0 %v412
        %v423 = vpop.f32.mrf.mxu0
        %v424 = vadd.f32 0.0, %v423
        %v425 = vpop.f32.mrf.mxu0
        %426 = vdwg.mxu0
        %427 = vst [vmem:[%s234] sm:$0xff] %v424
        %v428 = vpack.c.bf16 %v407, %v407
        %429 = vxpose.xlu0.c.b16.start [1/8] %v428, 128
        %430 = vxpose.xlu0.c.b16.cont [2/8] 0, 128
        %431 = vxpose.xlu0.c.b16.cont [3/8] 0, 128
        %432 = vxpose.xlu0.c.b16.cont [4/8] 0, 128
        %433 = vxpose.xlu0.c.b16.cont [5/8] 0, 128
        %434 = vxpose.xlu0.c.b16.cont [6/8] 0, 128
        %435 = vxpose.xlu0.c.b16.cont [7/8] 0, 128
        %436 = vxpose.xlu0.c.b16.end [8/8] 0, 128
        %v437 = vpop.trf.xlu0
        %v438 = vpop.trf.xlu0
        %v439 = vpop.trf.xlu0
        %v440 = vpop.trf.xlu0
        %v441 = vpop.trf.xlu0
        %v442 = vpop.trf.xlu0
        %v443 = vpop.trf.xlu0
        %v444 = vpop.trf.xlu0
        %vm445 = vcmask 64512
        %v447 = vsel %vm445, %v437, 0
        %v449 = vsel %vm279, %v252, 0
        %451 = vmatpush.bf16.msra.mxu0 0
        %452 = vmatpush.bf16.msra.mxu0 0
        %453 = vmatpush.bf16.msra.mxu0 0
        %454 = vmatpush.bf16.msra.mxu0 0
        %455 = vmatpush.bf16.msra.mxu0 0
        %456 = vmatpush.bf16.msra.mxu0 0
        %457 = vmatpush.bf16.msra.mxu0 0
        %458 = vmatpush.bf16.msra.mxu0 %v449
        %459 = vmatmul.bf16.gmra.mxu0 %v447
        %v460 = vpop.f32.mrf.mxu0
        %v461 = vadd.f32 0.0, %v460
        %v462 = vpop.f32.mrf.mxu0
        %v463 = vadd.f32 0.0, %v462
        %464 = vdwg.mxu0
        %465 = vst [vmem:[%s241] sm:$0xff] %v461
        %466 = vst [vmem:[%s241 + $0x8] sm:$0xff] %v463
        %s467 = sand.u32 %s125, 1
        %s468 = scalar_lea.sflag [#allocation3], %s467
        %s469 = sand.u32 %s125, 1
        %s470 = smul.addr %s469, 8
        %s471 = scalar_lea.vmem [#allocation2], %s470
        %s472 = sand.u32 %s151, 1
        %s473 = scalar_lea.sflag [#allocation5], %s472
        %s474 = sand.u32 %s151, 1
        %s475 = smul.addr %s474, 16
        %s476 = scalar_lea.vmem [#allocation4], %s475
        // Predicated region
        $region37: #{cross_attention.1} parent=35 // pred_check
          %p477 = pneg %p135
        $region38: #{cross_attention.1} parent=35 // pred_check_branch
          %479 = sbr.rel (%p477) target = $region40
        $region39: #{cross_attention.1} parent=35 // pred_region
          %481 = vsyncadd %s468, 0
          %s482 = smul.addr %s23, 8
          %s483 = scalar_lea.hbm %s4, %s482
          %s485 = sshll.u32 %s471, 4
          %s486 = int_to_ptr.vmem [resolvable:$true] %s485
          %s487 = sshll.u32 %s483, 4
          %s488 = int_to_ptr.hbm [resolvable:$true] %s487
          %490 = dma.vmem_to_hbm [thread:$0]  %s486, 128, %s488, %s468
        $region40: #{cross_attention.1} parent=35 // pred_fallthru
          _
        // Predicated region
        $region41: #{cross_attention.1} parent=35 // pred_check
          %p491 = pneg %p161
        $region42: #{cross_attention.1} parent=35 // pred_check_branch
          %493 = sbr.rel (%p491) target = $region44
        $region43: #{cross_attention.1} parent=35 // pred_region
          %495 = vsyncadd %s473, 0
          %s496 = smul.addr %s23, 2
          %s497 = smul.addr %s496, 8
          %s498 = scalar_lea.hbm %s5, %s497
          %s499 = sshll.u32 %s476, 4
          %s500 = int_to_ptr.vmem [resolvable:$true] %s499
          %s501 = sshll.u32 %s498, 4
          %s502 = int_to_ptr.hbm [resolvable:$true] %s501
          %507 = dma.vmem_to_hbm [thread:$0]  %s500, 256, %s502, %s473, 128, 128, 8
        $region44: #{cross_attention.1} parent=35 // pred_fallthru
          _
      $region36: #{cross_attention.1} parent=5 // pred_fallthru
        _
      %p508 = scmp.le.s32.totalorder 2, %s18
      // Predicated region
      $region45: #{cross_attention.1} parent=5 // pred_check
        %p509 = pneg %p508
      $region46: #{cross_attention.1} parent=5 // pred_check_branch
        %511 = sbr.rel (%p509) target = $region48
      $region47: #{cross_attention.1} parent=5 // pred_region
        %s512 = ssub.s32 %s18, 2
        // Predicated region
        $region49: #{cross_attention.1} parent=47 // pred_check
          %p513 = pneg %p141
        $region50: #{cross_attention.1} parent=47 // pred_check_branch
          %515 = sbr.rel (%p513) target = $region52
        $region51: #{cross_attention.1} parent=47 // pred_region
          %s516 = sand.u32 %s126, 1
          %s517 = scalar_lea.sflag [#allocation3], %s516
          %s518 = sand.u32 %s126, 1
          %s519 = smul.addr %s518, 8
          %s520 = scalar_lea.vmem [#allocation2], %s519
          %522 = dma.done %s517, 128
        $region52: #{cross_attention.1} parent=47 // pred_fallthru
          _
        // Predicated region
        $region53: #{cross_attention.1} parent=47 // pred_check
          %p523 = pneg %p167
        $region54: #{cross_attention.1} parent=47 // pred_check_branch
          %525 = sbr.rel (%p523) target = $region56
        $region55: #{cross_attention.1} parent=47 // pred_region
          %s526 = sand.u32 %s152, 1
          %s527 = scalar_lea.sflag [#allocation5], %s526
          %s528 = sand.u32 %s152, 1
          %s529 = smul.addr %s528, 16
          %s530 = scalar_lea.vmem [#allocation4], %s529
          %532 = dma.done %s527, 256
        $region56: #{cross_attention.1} parent=47 // pred_fallthru
          _
      $region48: #{cross_attention.1} parent=5 // pred_fallthru
        _
    $region6: #{cross_attention.1} parent=1 // loop_footer
      %s22 = sadd.s32 1, %s18
    $region7: #{cross_attention.1} parent=1 // loop_footer_branch
      %17 = sbr.rel target = $region3
    $region8: #{cross_attention.1} parent=1 // loop_exit
      _
    %533 = vsyncpa [#allocation3], 1
    %s534 = scalar_lea.sflag [#allocation3], 1
    %535 = vsyncpa %s534, 1
    %536 = vsyncpa [#allocation5], 1
    %s537 = scalar_lea.sflag [#allocation5], 1
    %538 = vsyncpa %s537, 1

</llo_original>
